<compile_context>
chip_gen: v7x
topology: tpu7x:2x2x1
jax: 0.10.0
libtpu: 0.0.40
codegen_flags: <defaults>
</compile_context>

<pallas_src>
import math
from typing import NamedTuple, Optional

import jax
import jax.numpy as jnp
from jax.experimental import pallas as pl
from jax.experimental.pallas import tpu as pltpu


# --------------------------------------------------------------------------- #
# Small helpers
# --------------------------------------------------------------------------- #
def _round_up(x, m):
    return (x + m - 1) // m * m


def _sublane_unit(dtype):
    """Minimum sublane multiple for the second-to-last dim, by dtype width."""
    itemsize = jnp.dtype(dtype).itemsize
    if itemsize >= 4:
        return 8     # f32
    if itemsize == 2:
        return 16    # bf16 / f16
    return 32        # int8 / fp8


def _device_kind():
    try:
        return jax.devices()[0].device_kind.lower()
    except Exception:
        return ""


def _vmem_cap_bytes(kind):
    """Physical VMEM per TensorCore (None -> leave compiler default alone)."""
    if "v6" in kind:
        return 128 << 20
    if "v5e" in kind or "v5 lite" in kind or "v5litepod" in kind:
        return 128 << 20
    if "v7" in kind or "tpu7" in kind or "7x" in kind:
        return 64 << 20
    return None


def _tile_targets(dtype, kind):
    """Target (tm, tn, tk): big enough to be compute-bound, fits VMEM."""
    if "v6" in kind:
        tm, tn, tk = 1024, 2048, 512      # ~22 MiB bf16 double-buffered
    elif "v5e" in kind or "v5 lite" in kind or "v5litepod" in kind:
        tm, tn, tk = 512, 512, 1024       # crosses v5e ~240 FLOP/B crossover
    else:                                  # v7x and unknown: conservative
        tm, tn, tk = 512, 1024, 1024      # ~11 MiB bf16, > v7x crossover
    if jnp.dtype(dtype).itemsize >= 4:    # f32: halve to keep footprint similar
        tm, tn, tk = max(256, tm // 2), max(256, tn // 2), max(256, tk // 2)
    return tm, tn, tk


def _pick_tile(dim_pad, unit, target):
    """Largest multiple of `unit` <= target that evenly divides dim_pad."""
    if dim_pad <= target:
        return dim_pad
    best = unit
    t = unit
    while t <= target:
        if dim_pad % t == 0:
            best = t
        t += unit
    return best


# --------------------------------------------------------------------------- #
# Kernels
# --------------------------------------------------------------------------- #
def _linear_kernel_acc(x_ref, w_ref, b_ref, o_ref, acc_ref):
    """Non-f32 output: accumulate in f32 scratch, single downcast at k==last."""
    k = pl.program_id(2)

    @pl.when(k == 0)
    def _():
        # Fold the bias into the accumulator init (no epilogue add pass).
        acc_ref[...] = jnp.broadcast_to(
            b_ref[...].astype(jnp.float32), acc_ref.shape
        )

    acc_ref[...] += jnp.dot(
        x_ref[...], w_ref[...], preferred_element_type=jnp.float32
    )

    @pl.when(k == pl.num_programs(2) - 1)
    def _():
        o_ref[...] = acc_ref[...].astype(o_ref.dtype)


def _linear_kernel_f32_out(x_ref, w_ref, b_ref, o_ref):
    """f32 output: accumulate directly into the K-resident output tile."""
    k = pl.program_id(2)

    @pl.when(k == 0)
    def _():
        o_ref[...] = jnp.broadcast_to(b_ref[...], o_ref.shape)

    o_ref[...] += jnp.dot(
        x_ref[...], w_ref[...], preferred_element_type=jnp.float32
    )


# --------------------------------------------------------------------------- #
# Parameter preparation (one-time, init-style) and forward
# --------------------------------------------------------------------------- #
class LinearParams(NamedTuple):
    w_t: jax.Array        # (K_pad, N_pad), weight dtype, pre-transposed+padded
    b2d: jax.Array        # (1, N_pad), float32 (kept f32 for exact bias add)
    out_features: int
    in_features: int


def prepare_linear_params(weight, bias=None) -> LinearParams:
    """One-time layout prep: transpose to (K, N) and pad to lane multiples."""
    weight = jnp.asarray(weight)
    N, K = weight.shape
    K_pad = _round_up(K, 128)
    N_pad = _round_up(N, 128)

    w_t = weight.T                              # (K, N): MXU-preferred rhs
    if (K_pad, N_pad) != (K, N):
        w_t = jnp.pad(w_t, ((0, K_pad - K), (0, N_pad - N)))

    if bias is None:
        b = jnp.zeros((N,), jnp.float32)
    else:
        b = jnp.asarray(bias, dtype=jnp.float32)
    b2d = b.reshape(1, N)
    if N_pad != N:
        b2d = jnp.pad(b2d, ((0, 0), (0, N_pad - N)))

    return LinearParams(w_t=w_t, b2d=b2d, out_features=N, in_features=K)


def mock_linear_forward(x, params: LinearParams, *,
                        tm: Optional[int] = None,
                        tn: Optional[int] = None,
                        tk: Optional[int] = None):
    """Pallas equivalent of MockLinear.forward.

    x:      (M, K)
    params: prepared once via prepare_linear_params(weight, bias)
    returns (M, N) = x @ weight.T + bias  (output dtype = weight dtype).
    """
    w_t, b2d, N, K = params
    M, Kx = x.shape
    assert Kx == K, f"in_features mismatch: {Kx} vs {K}"
    dtype = w_t.dtype

    # features.type(dtype=self.weight.dtype)
    x = x.astype(dtype)

    K_pad, N_pad = w_t.shape
    sub = _sublane_unit(dtype)                  # dtype-aware sublane rounding
    M_pad = _round_up(M, sub)
    if (M_pad, K_pad) != (M, K):
        x = jnp.pad(x, ((0, M_pad - M), (0, K_pad - K)))

    kind = _device_kind()
    tm_t, tn_t, tk_t = _tile_targets(dtype, kind)
    if tm is None:
        tm = _pick_tile(M_pad, sub, tm_t)
    if tn is None:
        tn = _pick_tile(N_pad, 128, tn_t)
    if tk is None:
        tk = _pick_tile(K_pad, 128, tk_t)

    grid = (M_pad // tm, N_pad // tn, K_pad // tk)

    out_dtype = dtype
    f32_out = jnp.dtype(out_dtype) == jnp.dtype(jnp.float32)
    kernel = _linear_kernel_f32_out if f32_out else _linear_kernel_acc
    scratch_shapes = [] if f32_out else [pltpu.VMEM((tm, tn), jnp.float32)]

    # VMEM footprint (double-buffered inputs/outputs + accumulator) -> limit.
    in_bytes = jnp.dtype(dtype).itemsize
    out_bytes = jnp.dtype(out_dtype).itemsize
    vmem_bytes = (
        2 * (tm * tk + tk * tn) * in_bytes      # x / W.T double buffers
        + 2 * tn * 4                            # bias (f32)
        + 2 * tm * tn * out_bytes               # output double buffer
        + (0 if f32_out else tm * tn * 4)       # f32 accumulator scratch
    )
    cap = _vmem_cap_bytes(kind)
    vmem_limit = None
    if cap is not None:
        vmem_limit = int(min(cap, max(32 << 20, int(vmem_bytes * 1.5) + (4 << 20))))

    cost = pl.CostEstimate(
        flops=2 * M * N * K,
        transcendentals=0,
        bytes_accessed=(M * K + K * N) * in_bytes + N * 4 + M * N * out_bytes,
    )

    out = pl.pallas_call(
        kernel,
        out_shape=jax.ShapeDtypeStruct((M_pad, N_pad), out_dtype),
        grid_spec=pltpu.PrefetchScalarGridSpec(
            num_scalar_prefetch=0,
            grid=grid,
            in_specs=[
                pl.BlockSpec((tm, tk), lambda i, j, k: (i, k)),   # x tile
                pl.BlockSpec((tk, tn), lambda i, j, k: (k, j)),   # W.T tile
                pl.BlockSpec((1, tn), lambda i, j, k: (0, j)),    # bias tile
            ],
            out_specs=pl.BlockSpec((tm, tn), lambda i, j, k: (i, j)),
            scratch_shapes=scratch_shapes,
        ),
        compiler_params=pltpu.CompilerParams(
            dimension_semantics=("parallel", "parallel", "arbitrary"),
            vmem_limit_bytes=vmem_limit,
        ),
        cost_estimate=cost,
    )(x, w_t, b2d)

    if (M_pad, N_pad) != (M, N):
        out = out[:M, :N]
    return out


def mock_linear(x, weight, bias=None, **tile_kwargs):
    """Convenience wrapper matching the module forward signature.

    For repeated calls, prefer prepare_linear_params(...) once at init and
    mock_linear_forward(x, params) per call (avoids re-transposing the weight).
    """
    return mock_linear_forward(x, prepare_linear_params(weight, bias),
                               **tile_kwargs)


# --------------------------------------------------------------------------- #
# Deterministic init matching the torch module's default initializers
# --------------------------------------------------------------------------- #
def init_params(key, in_features, out_features, dtype=jnp.float32):
    """Kaiming-uniform(a=sqrt(5)) weight + BiasUniformInitializer(in_features)."""
    kw, kb = jax.random.split(key)
    # kaiming_uniform(a=sqrt(5)): bound = sqrt(6/((1+a^2)*fan_in)) = 1/sqrt(fan_in)
    w_bound = 1.0 / math.sqrt(in_features)
    weight = jax.random.uniform(
        kw, (out_features, in_features), dtype=dtype,
        minval=-w_bound, maxval=w_bound)
    b_bound = 1.0 / math.sqrt(in_features)
    bias = jax.random.uniform(
        kb, (out_features,), dtype=dtype, minval=-b_bound, maxval=b_bound)
    return weight, bias


if __name__ == "__main__":
    batch = 8
    in_features = 32
    out_features = 16

    key = jax.random.PRNGKey(0)
    kx, kp = jax.random.split(key)

    x = jax.random.normal(kx, (batch, in_features), dtype=jnp.float32)
    weight, bias = init_params(kp, in_features, out_features, dtype=jnp.float32)

    # One-time (init-time) layout prep, then the hot-path forward.
    params = prepare_linear_params(weight, bias)
    out = mock_linear_forward(x, params)
    out = jax.block_until_ready(out)

    # Reference check in plain JAX (same semantics as torch F.linear).
    ref = x.astype(weight.dtype) @ weight.T + bias
    assert out.shape == (batch, out_features)
    assert out.dtype == weight.dtype
    assert jnp.allclose(out, ref, atol=1e-5, rtol=1e-5)

    print("KERNEL_OK")
</pallas_src>

<mosaic_0001>
module attributes {stable_mosaic.version = 11 : i64} {
  func.func @_linear_kernel_f32_out(%arg0: i32, %arg1: i32, %arg2: i32, %arg3: memref<8x128xf32, #tpu.memory_space<vmem>>, %arg4: memref<128x128xf32, #tpu.memory_space<vmem>>, %arg5: memref<1x128xf32, #tpu.memory_space<vmem>>, %arg6: memref<8x128xf32, #tpu.memory_space<vmem>>) attributes {dimension_semantics = [#tpu.dimension_semantics<parallel>, #tpu.dimension_semantics<parallel>, #tpu.dimension_semantics<arbitrary>], iteration_bounds = array<i64: 1, 1, 1>, scalar_prefetch = 0 : i64, scratch_operands = 0 : i64, tpu.core_type = #tpu.core_type<tc>, window_params = [{transform_indices = @transform_0, window_bounds = array<i64: 8, 128>}, {transform_indices = @transform_1, window_bounds = array<i64: 128, 128>}, {transform_indices = @transform_2, window_bounds = array<i64: 1, 128>}, {transform_indices = @transform_3, window_bounds = array<i64: 8, 128>}]} {
    %c0_i32 = arith.constant 0 : i32
    %0 = arith.cmpi eq, %arg2, %c0_i32 : i32
    %1 = arith.extui %0 : i1 to i32
    %c0_i32_0 = arith.constant 0 : i32
    %2 = arith.cmpi ne, %1, %c0_i32_0 : i32
    scf.if %2 {
      %c0_8 = arith.constant 0 : index
      %c0_9 = arith.constant 0 : index
      %9 = vector.load %arg5[%c0_8, %c0_9] : memref<1x128xf32, #tpu.memory_space<vmem>>, vector<1x128xf32>
      %10 = vector.shape_cast %9 : vector<1x128xf32> to vector<1x128xf32>
      %11 = vector.broadcast %10 : vector<1x128xf32> to vector<8x128xf32>
      %c0_10 = arith.constant 0 : index
      %c0_11 = arith.constant 0 : index
      %12 = vector.load %arg6[%c0_10, %c0_11] : memref<8x128xf32, #tpu.memory_space<vmem>>, vector<8x128xf32>
      tpu.vector_store %arg6[%c0_10, %c0_11], %11 {strides = array<i32>} : memref<8x128xf32, #tpu.memory_space<vmem>>, vector<8x128xf32>,
    } else {
    }
    %c0 = arith.constant 0 : index
    %c0_1 = arith.constant 0 : index
    %3 = vector.load %arg6[%c0, %c0_1] : memref<8x128xf32, #tpu.memory_space<vmem>>, vector<8x128xf32>
    %c0_2 = arith.constant 0 : index
    %c0_3 = arith.constant 0 : index
    %4 = vector.load %arg3[%c0_2, %c0_3] : memref<8x128xf32, #tpu.memory_space<vmem>>, vector<8x128xf32>
    %c0_4 = arith.constant 0 : index
    %c0_5 = arith.constant 0 : index
    %5 = vector.load %arg4[%c0_4, %c0_5] : memref<128x128xf32, #tpu.memory_space<vmem>>, vector<128x128xf32>
    %cst = arith.constant dense<0.000000e+00> : vector<8x128xf32>
    %6 = tpu.matmul %4, %5, %cst {dimension_numbers = #tpu.dot_dimension_numbers<[1], [0], [0], [1], [0, 0, 1, 1], [], []>} : vector<8x128xf32>, vector<128x128xf32>, vector<8x128xf32> -> vector<8x128xf32>
    %7 = arith.addf %3, %6 : vector<8x128xf32>
    %c0_6 = arith.constant 0 : index
    %c0_7 = arith.constant 0 : index
    %8 = vector.load %arg6[%c0_6, %c0_7] : memref<8x128xf32, #tpu.memory_space<vmem>>, vector<8x128xf32>
    tpu.vector_store %arg6[%c0_6, %c0_7], %7 {strides = array<i32>} : memref<8x128xf32, #tpu.memory_space<vmem>>, vector<8x128xf32>,
    return
  }
  func.func @transform_0(%arg0: i32, %arg1: i32, %arg2: i32) -> (i32, i32) {
    %c0_i32 = arith.constant 0 : i32
    return %arg0, %arg2 : i32, i32
  }
  func.func @transform_1(%arg0: i32, %arg1: i32, %arg2: i32) -> (i32, i32) {
    %c0_i32 = arith.constant 0 : i32
    return %arg2, %arg1 : i32, i32
  }
  func.func @transform_2(%arg0: i32, %arg1: i32, %arg2: i32) -> (i32, i32) {
    %c0_i32 = arith.constant 0 : i32
    %c0_i32_0 = arith.constant 0 : i32
    return %c0_i32, %arg1 : i32, i32
  }
  func.func @transform_3(%arg0: i32, %arg1: i32, %arg2: i32) -> (i32, i32) {
    %c0_i32 = arith.constant 0 : i32
    return %arg0, %arg1 : i32, i32
  }
}

</mosaic_0001>

<llo_original>
// kernel: tpu_custom_call.1
$region0: #{tpu_custom_call.1}
  #allocation0 [shape = 'u32[]', space=smem, size = 0x4, offset = 0x4, fixed_abs, tag = 'smem constant byte address 0x4 - core index']
  #allocation1 [shape = 'u32[144,128]{1,0:T(1,128)}', space=vmem, size = 0x12000, scoped, tag = 'internal scratch']
  %s0 = inlined_call_operand.hbm [shape: f32[8,128], index: 0, kind: input, shape index: {}]
  %s1 = inlined_call_operand.hbm [shape: f32[128,128], index: 1, kind: input, shape index: {}]
  %s2 = inlined_call_operand.vmem [shape: f32[1,128], index: 2, kind: input, shape index: {}]
  %s3 = inlined_call_operand.hbm [shape: f32[8,128], index: 3, kind: output, shape index: {}]
  %s4 = sld [smem:[#allocation0]]
  $region34: #{tpu_custom_call.1} parent=0
    _
  %s6 = ssub.s32 1, %s4
  %s7 = scalar_select 0, %s6, %s4
  $region1: #{tpu_custom_call.1} parent=0
    #allocation2 [shape = 'u8[4096]{0}', space=vmem, size = 0x1000, scoped, tag = 'input window, operand 0, single buffered']
    #allocation3 [shape = 's32[1]{0}', space=sflag, size = 0x4, scoped, tag = 'scoped memory for tpu_custom_call.1']
    #allocation4 [shape = 's32[1]{0}', space=sflag, size = 0x4, scoped, tag = 'scoped memory for tpu_custom_call.1']
    #allocation5 [shape = 'u8[65536]{0}', space=vmem, size = 0x10000, scoped, tag = 'input window, operand 1, single buffered']
    #allocation6 [shape = 's32[1]{0}', space=sflag, size = 0x4, scoped, tag = 'scoped memory for tpu_custom_call.1']
    #allocation7 [shape = 'u8[4096]{0}', space=vmem, size = 0x1000, scoped, tag = 'output window, operand 0, single buffered']
    %8 = vsyncpa [#allocation3], 0
    %9 = vsyncpa [#allocation6], 0
    %10 = vsyncpa [#allocation4], 0
    // Predicated region
    $region2: #{tpu_custom_call.1} parent=1 // pred_check
      _
    $region3: #{tpu_custom_call.1} parent=1 // pred_check_branch
      %12 = sbr.rel (0) target = $region5
    $region4: #{tpu_custom_call.1} parent=1 // pred_region
      %s14 = ssub.s32 128, 128
      %15 = vsyncadd [#allocation3], %s14
      %s17 = sshll.u32 [#allocation2], 4
      %s18 = int_to_ptr.vmem [resolvable:$true] %s17
      %20 = dma.hbm_to_vmem [thread:$0]  %s0, 128, %s18, [#allocation3]
    $region5: #{tpu_custom_call.1} parent=1 // pred_fallthru
      _
    // Predicated region
    $region6: #{tpu_custom_call.1} parent=1 // pred_check
      _
    $region7: #{tpu_custom_call.1} parent=1 // pred_check_branch
      %22 = sbr.rel (0) target = $region9
    $region8: #{tpu_custom_call.1} parent=1 // pred_region
      %s24 = ssub.s32 2048, 2048
      %25 = vsyncadd [#allocation6], %s24
      %s26 = sshll.u32 [#allocation5], 4
      %s27 = int_to_ptr.vmem [resolvable:$true] %s26
      %32 = dma.hbm_to_vmem [thread:$0]  %s1, 2048, %s27, [#allocation6], 128, 128, 8
    $region9: #{tpu_custom_call.1} parent=1 // pred_fallthru
      _
    // Predicated region
    $region10: #{tpu_custom_call.1} parent=1 // pred_check
      _
    $region11: #{tpu_custom_call.1} parent=1 // pred_check_branch
      %34 = sbr.rel (0) target = $region13
    $region12: #{tpu_custom_call.1} parent=1 // pred_region
      _
    $region13: #{tpu_custom_call.1} parent=1 // pred_fallthru
      _
    // Predicated region
    $region14: #{tpu_custom_call.1} parent=1 // pred_check
      _
    $region15: #{tpu_custom_call.1} parent=1 // pred_check_branch
      %36 = sbr.rel (0) target = $region17
    $region16: #{tpu_custom_call.1} parent=1 // pred_region
      %37 = dma.done [#allocation3], 128
    $region17: #{tpu_custom_call.1} parent=1 // pred_fallthru
      _
    // Predicated region
    $region18: #{tpu_custom_call.1} parent=1 // pred_check
      _
    $region19: #{tpu_custom_call.1} parent=1 // pred_check_branch
      %39 = sbr.rel (0) target = $region21
    $region20: #{tpu_custom_call.1} parent=1 // pred_region
      %40 = dma.done [#allocation6], 2048
    $region21: #{tpu_custom_call.1} parent=1 // pred_fallthru
      _
    %p41 = scmp.eq.s32.totalorder 0, 0
    // Predicated region
    $region22: #{tpu_custom_call.1} parent=1 // pred_check
      %p42 = pneg %p41
    $region23: #{tpu_custom_call.1} parent=1 // pred_check_branch
      %44 = sbr.rel (%p42) target = $region25
    $region24: #{tpu_custom_call.1} parent=1 // pred_region
      %v45 = vld [vmem:[%s2] sm:$0x1]
      %v47 = vlaneseq
      %v48 = vshrl.u32 %v47, 7
      %v49 = vsub.s32 0, %v48
      %v50 = vrot.slane %v45, %v49
      %52 = vst [vmem:[#allocation7] sm:$0xff] %v50
    $region25: #{tpu_custom_call.1} parent=1 // pred_fallthru
      _
    %v53 = vld [vmem:[#allocation7] sm:$0xff]
    %v54 = vld [vmem:[#allocation2] sm:$0xff]
    %v55 = vld [vmem:[#allocation5] sm:$0xff]
    %v56 = vld [vmem:[#allocation5 + $0x8] sm:$0xff]
    %v57 = vld [vmem:[#allocation5 + $0x10] sm:$0xff]
    %v58 = vld [vmem:[#allocation5 + $0x18] sm:$0xff]
    %v59 = vld [vmem:[#allocation5 + $0x20] sm:$0xff]
    %v60 = vld [vmem:[#allocation5 + $0x28] sm:$0xff]
    %v61 = vld [vmem:[#allocation5 + $0x30] sm:$0xff]
    %v62 = vld [vmem:[#allocation5 + $0x38] sm:$0xff]
    %v63 = vld [vmem:[#allocation5 + $0x40] sm:$0xff]
    %v64 = vld [vmem:[#allocation5 + $0x48] sm:$0xff]
    %v65 = vld [vmem:[#allocation5 + $0x50] sm:$0xff]
    %v66 = vld [vmem:[#allocation5 + $0x58] sm:$0xff]
    %v67 = vld [vmem:[#allocation5 + $0x60] sm:$0xff]
    %v68 = vld [vmem:[#allocation5 + $0x68] sm:$0xff]
    %v69 = vld [vmem:[#allocation5 + $0x70] sm:$0xff]
    %v70 = vld [vmem:[#allocation5 + $0x78] sm:$0xff]
    %71 = vmatprep.subr.mxu0 0.0
    %72 = vmatpush1.msra.mxu0 %v55
    %73 = vmatprep.subr.mxu0 0.0
    %74 = vmatpush1.msra.mxu0 %v56
    %75 = vmatprep.subr.mxu0 0.0
    %76 = vmatpush1.msra.mxu0 %v57
    %77 = vmatprep.subr.mxu0 0.0
    %78 = vmatpush1.msra.mxu0 %v58
    %79 = vmatprep.subr.mxu0 0.0
    %80 = vmatpush1.msra.mxu0 %v59
    %81 = vmatprep.subr.mxu0 0.0
    %82 = vmatpush1.msra.mxu0 %v60
    %83 = vmatprep.subr.mxu0 0.0
    %84 = vmatpush1.msra.mxu0 %v61
    %85 = vmatprep.subr.mxu0 0.0
    %86 = vmatpush1.msra.mxu0 %v62
    %87 = vmatprep.subr.mxu0 0.0
    %88 = vmatpush1.msra.mxu0 %v63
    %89 = vmatprep.subr.mxu0 0.0
    %90 = vmatpush1.msra.mxu0 %v64
    %91 = vmatprep.subr.mxu0 0.0
    %92 = vmatpush1.msra.mxu0 %v65
    %93 = vmatprep.subr.mxu0 0.0
    %94 = vmatpush1.msra.mxu0 %v66
    %95 = vmatprep.subr.mxu0 0.0
    %96 = vmatpush1.msra.mxu0 %v67
    %97 = vmatprep.subr.mxu0 0.0
    %98 = vmatpush1.msra.mxu0 %v68
    %99 = vmatprep.subr.mxu0 0.0
    %100 = vmatpush1.msra.mxu0 %v69
    %101 = vmatprep.subr.mxu0 0.0
    %102 = vmatpush1.msra.mxu0 %v70
    %103 = vmatprep.subr.mxu0 0.0
    %104 = vmatpush1.msra.mxu0 0.0
    %105 = vmatprep.subr.mxu0 0.0
    %106 = vmatpush1.msra.mxu0 0.0
    %107 = vmatprep.subr.mxu0 0.0
    %108 = vmatpush1.msra.mxu0 0.0
    %109 = vmatprep.subr.mxu0 0.0
    %110 = vmatpush1.msra.mxu0 0.0
    %111 = vmatprep.subr.mxu0 0.0
    %112 = vmatpush1.msra.mxu0 0.0
    %113 = vmatprep.subr.mxu0 0.0
    %114 = vmatpush1.msra.mxu0 0.0
    %115 = vmatprep.subr.mxu0 0.0
    %116 = vmatpush1.msra.mxu0 0.0
    %117 = vmatprep.subr.mxu0 0.0
    %118 = vmatpush1.msra.mxu0 0.0
    %119 = vmatprep.subr.mxu0 0.0
    %120 = vmatpush1.msra.mxu0 0.0
    %121 = vmatprep.subr.mxu0 0.0
    %122 = vmatpush1.msra.mxu0 0.0
    %123 = vmatprep.subr.mxu0 0.0
    %124 = vmatpush1.msra.mxu0 0.0
    %125 = vmatprep.subr.mxu0 0.0
    %126 = vmatpush1.msra.mxu0 0.0
    %127 = vmatprep.subr.mxu0 0.0
    %128 = vmatpush1.msra.mxu0 0.0
    %129 = vmatprep.subr.mxu0 0.0
    %130 = vmatpush1.msra.mxu0 0.0
    %131 = vmatprep.subr.mxu0 0.0
    %132 = vmatpush1.msra.mxu0 0.0
    %133 = vmatprep.subr.mxu0 0.0
    %134 = vmatpush1.msra.mxu0 0.0
    %135 = vmatprep.mubr.f32.mxu0 0.0
    %136 = vmatmul.mubr.f32.gmra.mrb[0].mxu0 %v54
    %v137 = vpop.f32.mrb[0].mxu0
    %v138 = vadd.f32 0.0, %v137
    %v139 = vpop.f32.mrb[0].mxu0
    %140 = vdwg.mxu0
    %v141 = vadd.f32 %v53, %v138
    %142 = vst [vmem:[#allocation7] sm:$0xff] %v141
    // Predicated region
    $region26: #{tpu_custom_call.1} parent=1 // pred_check
      _
    $region27: #{tpu_custom_call.1} parent=1 // pred_check_branch
      %144 = sbr.rel (0) target = $region29
    $region28: #{tpu_custom_call.1} parent=1 // pred_region
      %s146 = ssub.s32 128, 128
      %147 = vsyncadd [#allocation4], %s146
      %s149 = sshll.u32 [#allocation7], 4
      %s150 = int_to_ptr.vmem [resolvable:$true] %s149
      %152 = dma.vmem_to_hbm [thread:$0]  %s150, 128, %s3, [#allocation4]
    $region29: #{tpu_custom_call.1} parent=1 // pred_fallthru
      _
    // Predicated region
    $region30: #{tpu_custom_call.1} parent=1 // pred_check
      _
    $region31: #{tpu_custom_call.1} parent=1 // pred_check_branch
      %154 = sbr.rel (0) target = $region33
    $region32: #{tpu_custom_call.1} parent=1 // pred_region
      %155 = dma.done [#allocation4], 128
    $region33: #{tpu_custom_call.1} parent=1 // pred_fallthru
      _
    %156 = vsyncpa [#allocation3], 1
    %157 = vsyncpa [#allocation6], 1
    %158 = vsyncpa [#allocation4], 1

</llo_original>
